<compile_context>
chip_gen: v7x
topology: tpu7x:2x2x1
jax: 0.10.0
libtpu: 0.0.40
codegen_flags: <defaults>
</compile_context>

<pallas_src>
import functools

import jax
import jax.numpy as jnp
from jax.experimental import pallas as pl
from jax.experimental.pallas import tpu as pltpu


def _round_up(v, m):
    return ((v + m - 1) // m) * m


def _pad2(a, rows, cols):
    r, c = a.shape
    return jnp.pad(a, ((0, rows - r), (0, cols - c)))


def mae_kernel(keep_thr,
               x_ref, r_ref,
               w1_ref, b1_ref, w2_ref, b2_ref, w3_ref, b3_ref,
               w4_ref, b4_ref, w5_ref, b5_ref, w6_ref, b6_ref,
               recon_ref, mask_ref):
    # Mask from uint8 random bytes: P(r < keep_thr) == keep_thr / 256.
    keep = r_ref[...].astype(jnp.int32) < keep_thr            # bool (bt, D)
    mask_f = keep.astype(jnp.float32)
    x_masked = x_ref[...] * mask_f

    # Encoder (all hidden dims pre-padded to multiples of 128 in the wrapper).
    h = jnp.maximum(
        jnp.dot(x_masked, w1_ref[...], preferred_element_type=jnp.float32)
        + b1_ref[...], 0.0)
    h = jnp.maximum(
        jnp.dot(h, w2_ref[...], preferred_element_type=jnp.float32)
        + b2_ref[...], 0.0)
    latent = (jnp.dot(h, w3_ref[...], preferred_element_type=jnp.float32)
              + b3_ref[...])

    # Decoder
    d = jnp.maximum(
        jnp.dot(latent, w4_ref[...], preferred_element_type=jnp.float32)
        + b4_ref[...], 0.0)
    d = jnp.maximum(
        jnp.dot(d, w5_ref[...], preferred_element_type=jnp.float32)
        + b5_ref[...], 0.0)
    recon = (jnp.dot(d, w6_ref[...], preferred_element_type=jnp.float32)
             + b6_ref[...])

    recon_ref[...] = recon.astype(recon_ref.dtype)
    mask_ref[...] = keep.astype(jnp.int8)   # 1 byte/elem; bool cast outside


def masked_autoencoder_forward(x, rand_u8, params, *,
                               mask_ratio=0.75, batch_tile=1024):
    """x: (B, D_in) float32, rand_u8: (B, D_in) uint8 random bytes.

    params: dict of transposed weights (in, out) and (1, out) biases.
    Returns (reconstructed (B, D_in) float32, mask (B, D_in) bool)."""
    B, D_in = x.shape
    keep_thr = int(round(float(mask_ratio) * 256.0))   # Python int -> literal

    w1, b1 = params["w1"], params["b1"]
    w2, b2 = params["w2"], params["b2"]
    w3, b3 = params["w3"], params["b3"]
    w4, b4 = params["w4"], params["b4"]
    w5, b5 = params["w5"], params["b5"]
    w6, b6 = params["w6"], params["b6"]

    # Zero-pad hidden dims up to multiples of 128 lanes (free math).
    H1 = _round_up(w1.shape[1], 128)
    H2 = _round_up(w2.shape[1], 128)
    L = _round_up(w3.shape[1], 128)
    w1p, b1p = _pad2(w1, D_in, H1), _pad2(b1, 1, H1)
    w2p, b2p = _pad2(w2, H1, H2), _pad2(b2, 1, H2)
    w3p, b3p = _pad2(w3, H2, L), _pad2(b3, 1, L)
    w4p, b4p = _pad2(w4, L, H2), _pad2(b4, 1, H2)
    w5p, b5p = _pad2(w5, H2, H1), _pad2(b5, 1, H1)
    w6p, b6p = _pad2(w6, H1, D_in), b6          # do NOT pad the output dim

    # Batch tiling: large tiles, ragged tail handled by padding the batch.
    bt = _round_up(max(8, min(batch_tile, _round_up(B, 8))), 8)
    Bp = _round_up(B, bt)
    if Bp != B:
        x = jnp.pad(x, ((0, Bp - B), (0, 0)))
        rand_u8 = jnp.pad(rand_u8, ((0, Bp - B), (0, 0)))

    def row_spec(shape):
        return pl.BlockSpec(shape, lambda i: (i, 0))

    def full_spec(shape):
        return pl.BlockSpec(shape, lambda i: (0, 0))

    in_specs = [
        row_spec((bt, D_in)),          # x
        row_spec((bt, D_in)),          # random bytes
        full_spec(w1p.shape), full_spec(b1p.shape),
        full_spec(w2p.shape), full_spec(b2p.shape),
        full_spec(w3p.shape), full_spec(b3p.shape),
        full_spec(w4p.shape), full_spec(b4p.shape),
        full_spec(w5p.shape), full_spec(b5p.shape),
        full_spec(w6p.shape), full_spec(b6p.shape),
    ]
    out_specs = (
        row_spec((bt, D_in)),          # reconstructed (f32)
        row_spec((bt, D_in)),          # mask (int8)
    )
    out_shape = (
        jax.ShapeDtypeStruct((Bp, D_in), jnp.float32),
        jax.ShapeDtypeStruct((Bp, D_in), jnp.int8),
    )

    recon, mask_i8 = pl.pallas_call(
        functools.partial(mae_kernel, keep_thr),
        out_shape=out_shape,
        grid_spec=pltpu.PrefetchScalarGridSpec(
            num_scalar_prefetch=0,
            grid=(Bp // bt,),
            in_specs=in_specs,
            out_specs=out_specs,
        ),
        compiler_params=pltpu.CompilerParams(
            dimension_semantics=("parallel",)),
    )(x, rand_u8, w1p, b1p, w2p, b2p, w3p, b3p, w4p, b4p, w5p, b5p, w6p, b6p)

    return recon[:B], mask_i8[:B].astype(jnp.bool_)


def init_params(key, input_dim, first_layer_dim, second_layer_dim, latent_dim):
    """Init mimicking nn.Linear default (uniform +-1/sqrt(fan_in)).

    Weights are stored already transposed: shape (in, out)."""
    dims = [
        (input_dim, first_layer_dim),         # encoder_fc1
        (first_layer_dim, second_layer_dim),  # encoder_fc2
        (second_layer_dim, latent_dim),       # encoder_fc3
        (latent_dim, second_layer_dim),       # decoder_fc1
        (second_layer_dim, first_layer_dim),  # decoder_fc2
        (first_layer_dim, input_dim),         # decoder_fc3
    ]
    params = {}
    keys = jax.random.split(key, 2 * len(dims))
    for idx, (fan_in, fan_out) in enumerate(dims):
        bound = 1.0 / (fan_in ** 0.5)
        w = jax.random.uniform(keys[2 * idx], (fan_in, fan_out),
                               minval=-bound, maxval=bound, dtype=jnp.float32)
        b = jax.random.uniform(keys[2 * idx + 1], (1, fan_out),
                               minval=-bound, maxval=bound, dtype=jnp.float32)
        params[f"w{idx + 1}"] = w
        params[f"b{idx + 1}"] = b
    return params


def reference_forward_with_mask(x, mask_bool, params):
    """Pure-JAX reference given an already-sampled mask (unpadded params)."""
    m = mask_bool.astype(jnp.float32)
    h = jax.nn.relu((x * m) @ params["w1"] + params["b1"])
    h = jax.nn.relu(h @ params["w2"] + params["b2"])
    latent = h @ params["w3"] + params["b3"]
    d = jax.nn.relu(latent @ params["w4"] + params["b4"])
    d = jax.nn.relu(d @ params["w5"] + params["b5"])
    recon = d @ params["w6"] + params["b6"]
    return recon


if __name__ == "__main__":
    # Small shapes consistent with the module: a plain MLP on (batch, input_dim).
    B = 16
    input_dim = 32
    first_layer_dim = 64
    second_layer_dim = 32
    latent_dim = 16
    mask_ratio = 0.75

    key = jax.random.PRNGKey(0)
    k_x, k_u, k_p = jax.random.split(key, 3)

    x = jax.random.normal(k_x, (B, input_dim), dtype=jnp.float32)
    # torch.rand equivalent, carried as 1-byte random values (thresholded in-kernel).
    rand_u8 = jax.random.bits(k_u, (B, input_dim), dtype=jnp.uint8)
    params = init_params(k_p, input_dim, first_layer_dim, second_layer_dim,
                         latent_dim)

    recon, mask = masked_autoencoder_forward(x, rand_u8, params,
                                             mask_ratio=mask_ratio,
                                             batch_tile=1024)
    jax.block_until_ready((recon, mask))

    # Shape / dtype checks.
    assert recon.shape == (B, input_dim) and recon.dtype == jnp.float32
    assert mask.shape == (B, input_dim) and mask.dtype == jnp.bool_

    # Mask matches the thresholded random bytes exactly.
    keep_thr = int(round(mask_ratio * 256.0))
    mask_expected = rand_u8.astype(jnp.int32) < keep_thr
    assert bool(jnp.all(mask == mask_expected))
    frac = float(jnp.mean(mask.astype(jnp.float32)))
    assert 0.5 < frac <= 1.0  # ~mask_ratio of elements are kept

    # Reconstruction matches a pure-JAX forward using the same mask.
    recon_ref = reference_forward_with_mask(x, mask, params)
    assert jnp.allclose(recon, recon_ref, atol=1e-4, rtol=1e-4)

    print("KERNEL_OK")
</pallas_src>

<mosaic_0001>
module attributes {stable_mosaic.version = 11 : i64} {
  func.func @mae_kernel(%arg0: i32, %arg1: memref<16x32xf32, #tpu.memory_space<vmem>>, %arg2: memref<16x32xi8, #tpu.memory_space<vmem>>, %arg3: memref<32x128xf32, #tpu.memory_space<vmem>>, %arg4: memref<1x128xf32, #tpu.memory_space<vmem>>, %arg5: memref<128x128xf32, #tpu.memory_space<vmem>>, %arg6: memref<1x128xf32, #tpu.memory_space<vmem>>, %arg7: memref<128x128xf32, #tpu.memory_space<vmem>>, %arg8: memref<1x128xf32, #tpu.memory_space<vmem>>, %arg9: memref<128x128xf32, #tpu.memory_space<vmem>>, %arg10: memref<1x128xf32, #tpu.memory_space<vmem>>, %arg11: memref<128x128xf32, #tpu.memory_space<vmem>>, %arg12: memref<1x128xf32, #tpu.memory_space<vmem>>, %arg13: memref<128x32xf32, #tpu.memory_space<vmem>>, %arg14: memref<1x32xf32, #tpu.memory_space<vmem>>, %arg15: memref<16x32xf32, #tpu.memory_space<vmem>>, %arg16: memref<16x32xi8, #tpu.memory_space<vmem>>) attributes {dimension_semantics = [#tpu.dimension_semantics<parallel>], iteration_bounds = array<i64: 1>, scalar_prefetch = 0 : i64, scratch_operands = 0 : i64, tpu.core_type = #tpu.core_type<tc>, window_params = [{transform_indices = @transform_0, window_bounds = array<i64: 16, 32>}, {transform_indices = @transform_1, window_bounds = array<i64: 16, 32>}, {pipeline_mode = #tpu.pipeline_mode<synchronous>, transform_indices = @transform_2, window_bounds = array<i64: 32, 128>}, {pipeline_mode = #tpu.pipeline_mode<synchronous>, transform_indices = @transform_3, window_bounds = array<i64: 1, 128>}, {pipeline_mode = #tpu.pipeline_mode<synchronous>, transform_indices = @transform_4, window_bounds = array<i64: 128, 128>}, {pipeline_mode = #tpu.pipeline_mode<synchronous>, transform_indices = @transform_5, window_bounds = array<i64: 1, 128>}, {pipeline_mode = #tpu.pipeline_mode<synchronous>, transform_indices = @transform_6, window_bounds = array<i64: 128, 128>}, {pipeline_mode = #tpu.pipeline_mode<synchronous>, transform_indices = @transform_7, window_bounds = array<i64: 1, 128>}, {pipeline_mode = #tpu.pipeline_mode<synchronous>, transform_indices = @transform_8, window_bounds = array<i64: 128, 128>}, {pipeline_mode = #tpu.pipeline_mode<synchronous>, transform_indices = @transform_9, window_bounds = array<i64: 1, 128>}, {pipeline_mode = #tpu.pipeline_mode<synchronous>, transform_indices = @transform_10, window_bounds = array<i64: 128, 128>}, {pipeline_mode = #tpu.pipeline_mode<synchronous>, transform_indices = @transform_11, window_bounds = array<i64: 1, 128>}, {pipeline_mode = #tpu.pipeline_mode<synchronous>, transform_indices = @transform_12, window_bounds = array<i64: 128, 32>}, {pipeline_mode = #tpu.pipeline_mode<synchronous>, transform_indices = @transform_13, window_bounds = array<i64: 1, 32>}, {transform_indices = @transform_14, window_bounds = array<i64: 16, 32>}, {transform_indices = @transform_15, window_bounds = array<i64: 16, 32>}]} {
    %c0 = arith.constant 0 : index
    %c0_0 = arith.constant 0 : index
    %0 = vector.load %arg2[%c0, %c0_0] : memref<16x32xi8, #tpu.memory_space<vmem>>, vector<16x32xi8>
    %1 = arith.extui %0 : vector<16x32xi8> to vector<16x32xi32>
    %c192_i32 = arith.constant 192 : i32
    %2 = vector.broadcast %c192_i32 : i32 to vector<16x32xi32>
    %3 = arith.cmpi slt, %1, %2 : vector<16x32xi32>
    %4 = arith.extui %3 : vector<16x32xi1> to vector<16x32xi32>
    %5 = arith.sitofp %4 : vector<16x32xi32> to vector<16x32xf32>
    %c0_1 = arith.constant 0 : index
    %c0_2 = arith.constant 0 : index
    %6 = vector.load %arg1[%c0_1, %c0_2] : memref<16x32xf32, #tpu.memory_space<vmem>>, vector<16x32xf32>
    %7 = arith.mulf %6, %5 : vector<16x32xf32>
    %c0_3 = arith.constant 0 : index
    %c0_4 = arith.constant 0 : index
    %8 = vector.load %arg3[%c0_3, %c0_4] : memref<32x128xf32, #tpu.memory_space<vmem>>, vector<32x128xf32>
    %cst = arith.constant dense<0.000000e+00> : vector<16x128xf32>
    %9 = tpu.matmul %7, %8, %cst {dimension_numbers = #tpu.dot_dimension_numbers<[1], [0], [0], [1], [0, 0, 1, 1], [], []>} : vector<16x32xf32>, vector<32x128xf32>, vector<16x128xf32> -> vector<16x128xf32>
    %c0_5 = arith.constant 0 : index
    %c0_6 = arith.constant 0 : index
    %10 = vector.load %arg4[%c0_5, %c0_6] : memref<1x128xf32, #tpu.memory_space<vmem>>, vector<1x128xf32>
    %11 = vector.broadcast %10 : vector<1x128xf32> to vector<16x128xf32>
    %12 = arith.addf %9, %11 : vector<16x128xf32>
    %cst_7 = arith.constant 0.000000e+00 : f32
    %13 = vector.broadcast %cst_7 : f32 to vector<16x128xf32>
    %14 = arith.maximumf %12, %13 : vector<16x128xf32>
    %c0_8 = arith.constant 0 : index
    %c0_9 = arith.constant 0 : index
    %15 = vector.load %arg5[%c0_8, %c0_9] : memref<128x128xf32, #tpu.memory_space<vmem>>, vector<128x128xf32>
    %cst_10 = arith.constant dense<0.000000e+00> : vector<16x128xf32>
    %16 = tpu.matmul %14, %15, %cst_10 {dimension_numbers = #tpu.dot_dimension_numbers<[1], [0], [0], [1], [0, 0, 1, 1], [], []>} : vector<16x128xf32>, vector<128x128xf32>, vector<16x128xf32> -> vector<16x128xf32>
    %c0_11 = arith.constant 0 : index
    %c0_12 = arith.constant 0 : index
    %17 = vector.load %arg6[%c0_11, %c0_12] : memref<1x128xf32, #tpu.memory_space<vmem>>, vector<1x128xf32>
    %18 = vector.broadcast %17 : vector<1x128xf32> to vector<16x128xf32>
    %19 = arith.addf %16, %18 : vector<16x128xf32>
    %cst_13 = arith.constant 0.000000e+00 : f32
    %20 = vector.broadcast %cst_13 : f32 to vector<16x128xf32>
    %21 = arith.maximumf %19, %20 : vector<16x128xf32>
    %c0_14 = arith.constant 0 : index
    %c0_15 = arith.constant 0 : index
    %22 = vector.load %arg7[%c0_14, %c0_15] : memref<128x128xf32, #tpu.memory_space<vmem>>, vector<128x128xf32>
    %cst_16 = arith.constant dense<0.000000e+00> : vector<16x128xf32>
    %23 = tpu.matmul %21, %22, %cst_16 {dimension_numbers = #tpu.dot_dimension_numbers<[1], [0], [0], [1], [0, 0, 1, 1], [], []>} : vector<16x128xf32>, vector<128x128xf32>, vector<16x128xf32> -> vector<16x128xf32>
    %c0_17 = arith.constant 0 : index
    %c0_18 = arith.constant 0 : index
    %24 = vector.load %arg8[%c0_17, %c0_18] : memref<1x128xf32, #tpu.memory_space<vmem>>, vector<1x128xf32>
    %25 = vector.broadcast %24 : vector<1x128xf32> to vector<16x128xf32>
    %26 = arith.addf %23, %25 : vector<16x128xf32>
    %c0_19 = arith.constant 0 : index
    %c0_20 = arith.constant 0 : index
    %27 = vector.load %arg9[%c0_19, %c0_20] : memref<128x128xf32, #tpu.memory_space<vmem>>, vector<128x128xf32>
    %cst_21 = arith.constant dense<0.000000e+00> : vector<16x128xf32>
    %28 = tpu.matmul %26, %27, %cst_21 {dimension_numbers = #tpu.dot_dimension_numbers<[1], [0], [0], [1], [0, 0, 1, 1], [], []>} : vector<16x128xf32>, vector<128x128xf32>, vector<16x128xf32> -> vector<16x128xf32>
    %c0_22 = arith.constant 0 : index
    %c0_23 = arith.constant 0 : index
    %29 = vector.load %arg10[%c0_22, %c0_23] : memref<1x128xf32, #tpu.memory_space<vmem>>, vector<1x128xf32>
    %30 = vector.broadcast %29 : vector<1x128xf32> to vector<16x128xf32>
    %31 = arith.addf %28, %30 : vector<16x128xf32>
    %cst_24 = arith.constant 0.000000e+00 : f32
    %32 = vector.broadcast %cst_24 : f32 to vector<16x128xf32>
    %33 = arith.maximumf %31, %32 : vector<16x128xf32>
    %c0_25 = arith.constant 0 : index
    %c0_26 = arith.constant 0 : index
    %34 = vector.load %arg11[%c0_25, %c0_26] : memref<128x128xf32, #tpu.memory_space<vmem>>, vector<128x128xf32>
    %cst_27 = arith.constant dense<0.000000e+00> : vector<16x128xf32>
    %35 = tpu.matmul %33, %34, %cst_27 {dimension_numbers = #tpu.dot_dimension_numbers<[1], [0], [0], [1], [0, 0, 1, 1], [], []>} : vector<16x128xf32>, vector<128x128xf32>, vector<16x128xf32> -> vector<16x128xf32>
    %c0_28 = arith.constant 0 : index
    %c0_29 = arith.constant 0 : index
    %36 = vector.load %arg12[%c0_28, %c0_29] : memref<1x128xf32, #tpu.memory_space<vmem>>, vector<1x128xf32>
    %37 = vector.broadcast %36 : vector<1x128xf32> to vector<16x128xf32>
    %38 = arith.addf %35, %37 : vector<16x128xf32>
    %cst_30 = arith.constant 0.000000e+00 : f32
    %39 = vector.broadcast %cst_30 : f32 to vector<16x128xf32>
    %40 = arith.maximumf %38, %39 : vector<16x128xf32>
    %c0_31 = arith.constant 0 : index
    %c0_32 = arith.constant 0 : index
    %41 = vector.load %arg13[%c0_31, %c0_32] : memref<128x32xf32, #tpu.memory_space<vmem>>, vector<128x32xf32>
    %cst_33 = arith.constant dense<0.000000e+00> : vector<16x32xf32>
    %42 = tpu.matmul %40, %41, %cst_33 {dimension_numbers = #tpu.dot_dimension_numbers<[1], [0], [0], [1], [0, 0, 1, 1], [], []>} : vector<16x128xf32>, vector<128x32xf32>, vector<16x32xf32> -> vector<16x32xf32>
    %c0_34 = arith.constant 0 : index
    %c0_35 = arith.constant 0 : index
    %43 = vector.load %arg14[%c0_34, %c0_35] : memref<1x32xf32, #tpu.memory_space<vmem>>, vector<1x32xf32>
    %44 = vector.broadcast %43 : vector<1x32xf32> to vector<16x32xf32>
    %45 = arith.addf %42, %44 : vector<16x32xf32>
    %c0_36 = arith.constant 0 : index
    %c0_37 = arith.constant 0 : index
    %46 = vector.load %arg15[%c0_36, %c0_37] : memref<16x32xf32, #tpu.memory_space<vmem>>, vector<16x32xf32>
    tpu.vector_store %arg15[%c0_36, %c0_37], %45 {strides = array<i32>} : memref<16x32xf32, #tpu.memory_space<vmem>>, vector<16x32xf32>,
    %47 = arith.extui %3 : vector<16x32xi1> to vector<16x32xi8>
    %c0_38 = arith.constant 0 : index
    %c0_39 = arith.constant 0 : index
    %48 = vector.load %arg16[%c0_38, %c0_39] : memref<16x32xi8, #tpu.memory_space<vmem>>, vector<16x32xi8>
    tpu.vector_store %arg16[%c0_38, %c0_39], %47 {strides = array<i32>} : memref<16x32xi8, #tpu.memory_space<vmem>>, vector<16x32xi8>,
    return
  }
  func.func @transform_0(%arg0: i32) -> (i32, i32) {
    %c0_i32 = arith.constant 0 : i32
    %c0_i32_0 = arith.constant 0 : i32
    return %arg0, %c0_i32 : i32, i32
  }
  func.func @transform_1(%arg0: i32) -> (i32, i32) {
    %c0_i32 = arith.constant 0 : i32
    %c0_i32_0 = arith.constant 0 : i32
    return %arg0, %c0_i32 : i32, i32
  }
  func.func @transform_2(%arg0: i32) -> (i32, i32) {
    %c0_i32 = arith.constant 0 : i32
    %c0_i32_0 = arith.constant 0 : i32
    %c0_i32_1 = arith.constant 0 : i32
    return %c0_i32, %c0_i32_0 : i32, i32
  }
  func.func @transform_3(%arg0: i32) -> (i32, i32) {
    %c0_i32 = arith.constant 0 : i32
    %c0_i32_0 = arith.constant 0 : i32
    %c0_i32_1 = arith.constant 0 : i32
    return %c0_i32, %c0_i32_0 : i32, i32
  }
  func.func @transform_4(%arg0: i32) -> (i32, i32) {
    %c0_i32 = arith.constant 0 : i32
    %c0_i32_0 = arith.constant 0 : i32
    %c0_i32_1 = arith.constant 0 : i32
    return %c0_i32, %c0_i32_0 : i32, i32
  }
  func.func @transform_5(%arg0: i32) -> (i32, i32) {
    %c0_i32 = arith.constant 0 : i32
    %c0_i32_0 = arith.constant 0 : i32
    %c0_i32_1 = arith.constant 0 : i32
    return %c0_i32, %c0_i32_0 : i32, i32
  }
  func.func @transform_6(%arg0: i32) -> (i32, i32) {
    %c0_i32 = arith.constant 0 : i32
    %c0_i32_0 = arith.constant 0 : i32
    %c0_i32_1 = arith.constant 0 : i32
    return %c0_i32, %c0_i32_0 : i32, i32
  }
  func.func @transform_7(%arg0: i32) -> (i32, i32) {
    %c0_i32 = arith.constant 0 : i32
    %c0_i32_0 = arith.constant 0 : i32
    %c0_i32_1 = arith.constant 0 : i32
    return %c0_i32, %c0_i32_0 : i32, i32
  }
  func.func @transform_8(%arg0: i32) -> (i32, i32) {
    %c0_i32 = arith.constant 0 : i32
    %c0_i32_0 = arith.constant 0 : i32
    %c0_i32_1 = arith.constant 0 : i32
    return %c0_i32, %c0_i32_0 : i32, i32
  }
  func.func @transform_9(%arg0: i32) -> (i32, i32) {
    %c0_i32 = arith.constant 0 : i32
    %c0_i32_0 = arith.constant 0 : i32
    %c0_i32_1 = arith.constant 0 : i32
    return %c0_i32, %c0_i32_0 : i32, i32
  }
  func.func @transform_10(%arg0: i32) -> (i32, i32) {
    %c0_i32 = arith.constant 0 : i32
    %c0_i32_0 = arith.constant 0 : i32
    %c0_i32_1 = arith.constant 0 : i32
    return %c0_i32, %c0_i32_0 : i32, i32
  }
  func.func @transform_11(%arg0: i32) -> (i32, i32) {
    %c0_i32 = arith.constant 0 : i32
    %c0_i32_0 = arith.constant 0 : i32
    %c0_i32_1 = arith.constant 0 : i32
    return %c0_i32, %c0_i32_0 : i32, i32
  }
  func.func @transform_12(%arg0: i32) -> (i32, i32) {
    %c0_i32 = arith.constant 0 : i32
    %c0_i32_0 = arith.constant 0 : i32
    %c0_i32_1 = arith.constant 0 : i32
    return %c0_i32, %c0_i32_0 : i32, i32
  }
  func.func @transform_13(%arg0: i32) -> (i32, i32) {
    %c0_i32 = arith.constant 0 : i32
    %c0_i32_0 = arith.constant 0 : i32
    %c0_i32_1 = arith.constant 0 : i32
    return %c0_i32, %c0_i32_0 : i32, i32
  }
  func.func @transform_14(%arg0: i32) -> (i32, i32) {
    %c0_i32 = arith.constant 0 : i32
    %c0_i32_0 = arith.constant 0 : i32
    return %arg0, %c0_i32 : i32, i32
  }
  func.func @transform_15(%arg0: i32) -> (i32, i32) {
    %c0_i32 = arith.constant 0 : i32
    %c0_i32_0 = arith.constant 0 : i32
    return %arg0, %c0_i32 : i32, i32
  }
}

</mosaic_0001>

<llo_original>
// kernel: tpu_custom_call.1
$region0: #{tpu_custom_call.1}
  #allocation0 [shape = 'u32[]', space=smem, size = 0x4, offset = 0x4, fixed_abs, tag = 'smem constant byte address 0x4 - core index']
  #allocation1 [shape = 'u32[144,128]{1,0:T(1,128)}', space=vmem, size = 0x12000, scoped, tag = 'internal scratch']
  %s0 = inlined_call_operand.hbm [shape: f32[16,32], index: 0, kind: input, shape index: {}]
  %s1 = inlined_call_operand.vmem [shape: u8[16,32], index: 1, kind: input, shape index: {}]
  %s2 = inlined_call_operand.vmem [shape: f32[32,128], index: 2, kind: input, shape index: {}]
  %s3 = inlined_call_operand.vmem [shape: f32[1,128], index: 3, kind: input, shape index: {}]
  %s4 = inlined_call_operand.vmem [shape: f32[128,128], index: 4, kind: input, shape index: {}]
  %s5 = inlined_call_operand.vmem [shape: f32[1,128], index: 5, kind: input, shape index: {}]
  %s6 = inlined_call_operand.hbm [shape: f32[128,128], index: 6, kind: input, shape index: {}]
  %s7 = inlined_call_operand.vmem [shape: f32[1,128], index: 7, kind: input, shape index: {}]
  %s8 = inlined_call_operand.hbm [shape: f32[128,128], index: 8, kind: input, shape index: {}]
  %s9 = inlined_call_operand.vmem [shape: f32[1,128], index: 9, kind: input, shape index: {}]
  %s10 = inlined_call_operand.hbm [shape: f32[128,128], index: 10, kind: input, shape index: {}]
  %s11 = inlined_call_operand.vmem [shape: f32[1,128], index: 11, kind: input, shape index: {}]
  %s12 = inlined_call_operand.vmem [shape: f32[128,32], index: 12, kind: input, shape index: {}]
  %s13 = inlined_call_operand.vmem [shape: f32[1,32], index: 13, kind: input, shape index: {}]
  %s14 = inlined_call_operand.hbm [shape: f32[16,32], index: 14, kind: output, shape index: {0}]
  %s15 = inlined_call_operand.hbm [shape: s8[16,32], index: 15, kind: output, shape index: {1}]
  %16 = xla_tuple %s14, %s15
  %s17 = sld [smem:[#allocation0]]
  $region90: #{tpu_custom_call.1} parent=0
    _
  %s19 = ssub.s32 1, %s17
  %s20 = scalar_select 0, %s19, %s17
  $region1: #{tpu_custom_call.1} parent=0
    #allocation2 [shape = 'u8[8192]{0}', space=vmem, size = 0x2000, scoped, tag = 'input window, operand 0, single buffered']
    #allocation3 [shape = 's32[1]{0}', space=sflag, size = 0x4, scoped, tag = 'scoped memory for tpu_custom_call.1']
    #allocation4 [shape = 's32[1]{0}', space=sflag, size = 0x4, scoped, tag = 'scoped memory for tpu_custom_call.1']
    #allocation5 [shape = 'u8[65536]{0}', space=vmem, size = 0x10000, scoped, tag = 'input window, operand 6, single buffered']
    #allocation6 [shape = 's32[1]{0}', space=sflag, size = 0x4, scoped, tag = 'scoped memory for tpu_custom_call.1']
    #allocation7 [shape = 'u8[65536]{0}', space=vmem, size = 0x10000, scoped, tag = 'input window, operand 8, single buffered']
    #allocation8 [shape = 'u8[65536]{0}', space=vmem, size = 0x10000, scoped, tag = 'input window, operand 10, single buffered']
    #allocation9 [shape = 's32[1]{0}', space=sflag, size = 0x4, scoped, tag = 'scoped memory for tpu_custom_call.1']
    #allocation10 [shape = 'u8[8192]{0}', space=vmem, size = 0x2000, scoped, tag = 'output window, operand 0, single buffered']
    #allocation11 [shape = 'u8[2048]{0}', space=vmem, size = 0x800, scoped, tag = 'output window, operand 1, single buffered']
    #allocation12 [shape = 's32[1]{0}', space=sflag, size = 0x4, scoped, tag = 'scoped memory for tpu_custom_call.1']
    %21 = vsyncpa [#allocation3], 0
    %22 = vsyncpa [#allocation6], 0
    %23 = vsyncpa [#allocation9], 0
    %24 = vsyncpa [#allocation4], 0
    %25 = vsyncpa [#allocation12], 0
    // Predicated region
    $region2: #{tpu_custom_call.1} parent=1 // pred_check
      _
    $region3: #{tpu_custom_call.1} parent=1 // pred_check_branch
      %27 = sbr.rel (0) target = $region5
    $region4: #{tpu_custom_call.1} parent=1 // pred_region
      %s29 = ssub.s32 256, 256
      %30 = vsyncadd [#allocation3], %s29
      %s31 = sshll.u32 [#allocation2], 4
      %s32 = int_to_ptr.vmem [resolvable:$true] %s31
      %37 = dma.hbm_to_vmem [thread:$0]  %s0, 256, %s32, [#allocation3], 128, 128, 8
    $region5: #{tpu_custom_call.1} parent=1 // pred_fallthru
      _
    // Predicated region
    $region6: #{tpu_custom_call.1} parent=1 // pred_check
      _
    $region7: #{tpu_custom_call.1} parent=1 // pred_check_branch
      %39 = sbr.rel (0) target = $region9
    $region8: #{tpu_custom_call.1} parent=1 // pred_region
      _
    $region9: #{tpu_custom_call.1} parent=1 // pred_fallthru
      _
    // Predicated region
    $region10: #{tpu_custom_call.1} parent=1 // pred_check
      _
    $region11: #{tpu_custom_call.1} parent=1 // pred_check_branch
      %41 = sbr.rel (0) target = $region13
    $region12: #{tpu_custom_call.1} parent=1 // pred_region
      _
    $region13: #{tpu_custom_call.1} parent=1 // pred_fallthru
      _
    // Predicated region
    $region14: #{tpu_custom_call.1} parent=1 // pred_check
      _
    $region15: #{tpu_custom_call.1} parent=1 // pred_check_branch
      %43 = sbr.rel (0) target = $region17
    $region16: #{tpu_custom_call.1} parent=1 // pred_region
      _
    $region17: #{tpu_custom_call.1} parent=1 // pred_fallthru
      _
    // Predicated region
    $region18: #{tpu_custom_call.1} parent=1 // pred_check
      _
    $region19: #{tpu_custom_call.1} parent=1 // pred_check_branch
      %45 = sbr.rel (0) target = $region21
    $region20: #{tpu_custom_call.1} parent=1 // pred_region
      _
    $region21: #{tpu_custom_call.1} parent=1 // pred_fallthru
      _
    // Predicated region
    $region22: #{tpu_custom_call.1} parent=1 // pred_check
      _
    $region23: #{tpu_custom_call.1} parent=1 // pred_check_branch
      %47 = sbr.rel (0) target = $region25
    $region24: #{tpu_custom_call.1} parent=1 // pred_region
      _
    $region25: #{tpu_custom_call.1} parent=1 // pred_fallthru
      _
    // Predicated region
    $region26: #{tpu_custom_call.1} parent=1 // pred_check
      _
    $region27: #{tpu_custom_call.1} parent=1 // pred_check_branch
      %49 = sbr.rel (0) target = $region29
    $region28: #{tpu_custom_call.1} parent=1 // pred_region
      %s51 = ssub.s32 2048, 2048
      %52 = vsyncadd [#allocation6], %s51
      %s53 = sshll.u32 [#allocation5], 4
      %s54 = int_to_ptr.vmem [resolvable:$true] %s53
      %59 = dma.hbm_to_vmem [thread:$0]  %s6, 2048, %s54, [#allocation6], 128, 128, 8
    $region29: #{tpu_custom_call.1} parent=1 // pred_fallthru
      _
    // Predicated region
    $region30: #{tpu_custom_call.1} parent=1 // pred_check
      _
    $region31: #{tpu_custom_call.1} parent=1 // pred_check_branch
      %61 = sbr.rel (0) target = $region33
    $region32: #{tpu_custom_call.1} parent=1 // pred_region
      _
    $region33: #{tpu_custom_call.1} parent=1 // pred_fallthru
      _
    // Predicated region
    $region34: #{tpu_custom_call.1} parent=1 // pred_check
      _
    $region35: #{tpu_custom_call.1} parent=1 // pred_check_branch
      %63 = sbr.rel (0) target = $region37
    $region36: #{tpu_custom_call.1} parent=1 // pred_region
      %s65 = ssub.s32 2048, 2048
      %66 = vsyncadd [#allocation6], %s65
      %s67 = sshll.u32 [#allocation7], 4
      %s68 = int_to_ptr.vmem [resolvable:$true] %s67
      %73 = dma.hbm_to_vmem [thread:$0]  %s8, 2048, %s68, [#allocation6], 128, 128, 8
    $region37: #{tpu_custom_call.1} parent=1 // pred_fallthru
      _
    // Predicated region
    $region38: #{tpu_custom_call.1} parent=1 // pred_check
      _
    $region39: #{tpu_custom_call.1} parent=1 // pred_check_branch
      %75 = sbr.rel (0) target = $region41
    $region40: #{tpu_custom_call.1} parent=1 // pred_region
      _
    $region41: #{tpu_custom_call.1} parent=1 // pred_fallthru
      _
    // Predicated region
    $region42: #{tpu_custom_call.1} parent=1 // pred_check
      _
    $region43: #{tpu_custom_call.1} parent=1 // pred_check_branch
      %77 = sbr.rel (0) target = $region45
    $region44: #{tpu_custom_call.1} parent=1 // pred_region
      %s79 = ssub.s32 2048, 2048
      %80 = vsyncadd [#allocation9], %s79
      %s81 = sshll.u32 [#allocation8], 4
      %s82 = int_to_ptr.vmem [resolvable:$true] %s81
      %87 = dma.hbm_to_vmem [thread:$0]  %s10, 2048, %s82, [#allocation9], 128, 128, 8
    $region45: #{tpu_custom_call.1} parent=1 // pred_fallthru
      _
    // Predicated region
    $region46: #{tpu_custom_call.1} parent=1 // pred_check
      _
    $region47: #{tpu_custom_call.1} parent=1 // pred_check_branch
      %89 = sbr.rel (0) target = $region49
    $region48: #{tpu_custom_call.1} parent=1 // pred_region
      _
    $region49: #{tpu_custom_call.1} parent=1 // pred_fallthru
      _
    // Predicated region
    $region50: #{tpu_custom_call.1} parent=1 // pred_check
      _
    $region51: #{tpu_custom_call.1} parent=1 // pred_check_branch
      %91 = sbr.rel (0) target = $region53
    $region52: #{tpu_custom_call.1} parent=1 // pred_region
      _
    $region53: #{tpu_custom_call.1} parent=1 // pred_fallthru
      _
    // Predicated region
    $region54: #{tpu_custom_call.1} parent=1 // pred_check
      _
    $region55: #{tpu_custom_call.1} parent=1 // pred_check_branch
      %93 = sbr.rel (0) target = $region57
    $region56: #{tpu_custom_call.1} parent=1 // pred_region
      _
    $region57: #{tpu_custom_call.1} parent=1 // pred_fallthru
      _
    // Predicated region
    $region58: #{tpu_custom_call.1} parent=1 // pred_check
      _
    $region59: #{tpu_custom_call.1} parent=1 // pred_check_branch
      %95 = sbr.rel (0) target = $region61
    $region60: #{tpu_custom_call.1} parent=1 // pred_region
      %96 = dma.done [#allocation3], 256
    $region61: #{tpu_custom_call.1} parent=1 // pred_fallthru
      _
    // Predicated region
    $region62: #{tpu_custom_call.1} parent=1 // pred_check
      _
    $region63: #{tpu_custom_call.1} parent=1 // pred_check_branch
      %98 = sbr.rel (0) target = $region65
    $region64: #{tpu_custom_call.1} parent=1 // pred_region
      %99 = dma.done [#allocation6], 2048
    $region65: #{tpu_custom_call.1} parent=1 // pred_fallthru
      _
    // Predicated region
    $region66: #{tpu_custom_call.1} parent=1 // pred_check
      _
    $region67: #{tpu_custom_call.1} parent=1 // pred_check_branch
      %101 = sbr.rel (0) target = $region69
    $region68: #{tpu_custom_call.1} parent=1 // pred_region
      %102 = dma.done [#allocation6], 2048
    $region69: #{tpu_custom_call.1} parent=1 // pred_fallthru
      _
    // Predicated region
    $region70: #{tpu_custom_call.1} parent=1 // pred_check
      _
    $region71: #{tpu_custom_call.1} parent=1 // pred_check_branch
      %104 = sbr.rel (0) target = $region73
    $region72: #{tpu_custom_call.1} parent=1 // pred_region
      %105 = dma.done [#allocation9], 2048
    $region73: #{tpu_custom_call.1} parent=1 // pred_fallthru
      _
    %v108 = vld [vmem:[%s1] sm:$0x3]
    %v109 = vld [vmem:[%s1 + $0x2] sm:$0x3]
    %v110 = vunpack.c.0.s8 %v108
    %v111 = vunpack.c.0.s8 %v109
    %v112 = vand.u32 %v110, 255
    %v113 = vand.u32 %v111, 255
    %vm114 = vcmp.lt.s32.totalorder %v112, 192
    %vm115 = vcmp.lt.s32.totalorder %v113, 192
    %v116 = vsel %vm114, 1, 0
    %v117 = vsel %vm115, 1, 0
    %v118 = vcvt.s32.f32 %v116
    %v119 = vcvt.s32.f32 %v117
    %v120 = vld [vmem:[#allocation2] sm:$0xff]
    %v121 = vld [vmem:[#allocation2 + $0x8] sm:$0xff]
    %v122 = vmul.f32 %v120, %v118
    %v123 = vmul.f32 %v121, %v119
    %v124 = vld [vmem:[%s2] sm:$0xff]
    %v125 = vld [vmem:[%s2 + $0x8] sm:$0xff]
    %v126 = vld [vmem:[%s2 + $0x10] sm:$0xff]
    %v127 = vld [vmem:[%s2 + $0x18] sm:$0xff]
    %v128 = vld [vmem:[%s3] sm:$0x1]
    %v130 = vlaneseq
    %v131 = vshrl.u32 %v130, 7
    %v132 = vsub.s32 0, %v131
    %v133 = vrot.slane %v128, %v132
    %vm135 = vcmask 261120
    %v137 = vsel %vm135, %v122, 0
    %v140 = vsel %vm135, %v123, 0
    %142 = vmatprep.subr.mxu0 0.0
    %143 = vmatpush1.msra.mxu0 %v124
    %144 = vmatprep.subr.mxu0 0.0
    %145 = vmatpush1.msra.mxu0 %v125
    %146 = vmatprep.subr.mxu0 0.0
    %147 = vmatpush1.msra.mxu0 %v126
    %148 = vmatprep.subr.mxu0 0.0
    %149 = vmatpush1.msra.mxu0 %v127
    %150 = vmatprep.subr.mxu0 0.0
    %151 = vmatpush1.msra.mxu0 0.0
    %152 = vmatprep.subr.mxu0 0.0
    %153 = vmatpush1.msra.mxu0 0.0
    %154 = vmatprep.subr.mxu0 0.0
    %155 = vmatpush1.msra.mxu0 0.0
    %156 = vmatprep.subr.mxu0 0.0
    %157 = vmatpush1.msra.mxu0 0.0
    %158 = vmatprep.subr.mxu0 0.0
    %159 = vmatpush1.msra.mxu0 0.0
    %160 = vmatprep.subr.mxu0 0.0
    %161 = vmatpush1.msra.mxu0 0.0
    %162 = vmatprep.subr.mxu0 0.0
    %163 = vmatpush1.msra.mxu0 0.0
    %164 = vmatprep.subr.mxu0 0.0
    %165 = vmatpush1.msra.mxu0 0.0
    %166 = vmatprep.subr.mxu0 0.0
    %167 = vmatpush1.msra.mxu0 0.0
    %168 = vmatprep.subr.mxu0 0.0
    %169 = vmatpush1.msra.mxu0 0.0
    %170 = vmatprep.subr.mxu0 0.0
    %171 = vmatpush1.msra.mxu0 0.0
    %172 = vmatprep.subr.mxu0 0.0
    %173 = vmatpush1.msra.mxu0 0.0
    %174 = vmatprep.subr.mxu0 0.0
    %175 = vmatpush1.msra.mxu0 0.0
    %176 = vmatprep.subr.mxu0 0.0
    %177 = vmatpush1.msra.mxu0 0.0
    %178 = vmatprep.subr.mxu0 0.0
    %179 = vmatpush1.msra.mxu0 0.0
    %180 = vmatprep.subr.mxu0 0.0
    %181 = vmatpush1.msra.mxu0 0.0
    %182 = vmatprep.subr.mxu0 0.0
    %183 = vmatpush1.msra.mxu0 0.0
    %184 = vmatprep.subr.mxu0 0.0
    %185 = vmatpush1.msra.mxu0 0.0
    %186 = vmatprep.subr.mxu0 0.0
    %187 = vmatpush1.msra.mxu0 0.0
    %188 = vmatprep.subr.mxu0 0.0
    %189 = vmatpush1.msra.mxu0 0.0
    %190 = vmatprep.subr.mxu0 0.0
    %191 = vmatpush1.msra.mxu0 0.0
    %192 = vmatprep.subr.mxu0 0.0
    %193 = vmatpush1.msra.mxu0 0.0
    %194 = vmatprep.subr.mxu0 0.0
    %195 = vmatpush1.msra.mxu0 0.0
    %196 = vmatprep.subr.mxu0 0.0
    %197 = vmatpush1.msra.mxu0 0.0
    %198 = vmatprep.subr.mxu0 0.0
    %199 = vmatpush1.msra.mxu0 0.0
    %200 = vmatprep.subr.mxu0 0.0
    %201 = vmatpush1.msra.mxu0 0.0
    %202 = vmatprep.subr.mxu0 0.0
    %203 = vmatpush1.msra.mxu0 0.0
    %204 = vmatprep.subr.mxu0 0.0
    %205 = vmatpush1.msra.mxu0 0.0
    %206 = vmatprep.mubr.f32.mxu0 0.0
    %207 = vmatmul.mubr.f32.gmra.mrb[0].mxu0 %v137
    %v208 = vpop.f32.mrb[0].mxu0
    %v209 = vadd.f32 %v133, %v208
    %v210 = vpop.f32.mrb[0].mxu0
    %211 = vmatprep.mubr.f32.mxu0 0.0
    %212 = vmatmul.mubr.f32.gmra.mrb[0].mxu0 %v140
    %v213 = vpop.f32.mrb[0].mxu0
    %v214 = vadd.f32 %v133, %v213
    %v215 = vpop.f32.mrb[0].mxu0
    %216 = vdwg.mxu0
    %v217 = vmax.f32 %v209, 0.0
    %v218 = vmax.f32 %v214, 0.0
    %v219 = vld [vmem:[%s4] sm:$0xff]
    %v220 = vld [vmem:[%s4 + $0x8] sm:$0xff]
    %v221 = vld [vmem:[%s4 + $0x10] sm:$0xff]
    %v222 = vld [vmem:[%s4 + $0x18] sm:$0xff]
    %v223 = vld [vmem:[%s4 + $0x20] sm:$0xff]
    %v224 = vld [vmem:[%s4 + $0x28] sm:$0xff]
    %v225 = vld [vmem:[%s4 + $0x30] sm:$0xff]
    %v226 = vld [vmem:[%s4 + $0x38] sm:$0xff]
    %v227 = vld [vmem:[%s4 + $0x40] sm:$0xff]
    %v228 = vld [vmem:[%s4 + $0x48] sm:$0xff]
    %v229 = vld [vmem:[%s4 + $0x50] sm:$0xff]
    %v230 = vld [vmem:[%s4 + $0x58] sm:$0xff]
    %v231 = vld [vmem:[%s4 + $0x60] sm:$0xff]
    %v232 = vld [vmem:[%s4 + $0x68] sm:$0xff]
    %v233 = vld [vmem:[%s4 + $0x70] sm:$0xff]
    %v234 = vld [vmem:[%s4 + $0x78] sm:$0xff]
    %v235 = vld [vmem:[%s5] sm:$0x1]
    %v237 = vlaneseq
    %v238 = vshrl.u32 %v237, 7
    %v239 = vsub.s32 0, %v238
    %v240 = vrot.slane %v235, %v239
    %242 = vmatprep.subr.mxu0 0.0
    %243 = vmatpush1.msra.mxu0 %v219
    %244 = vmatprep.subr.mxu0 0.0
    %245 = vmatpush1.msra.mxu0 %v220
    %246 = vmatprep.subr.mxu0 0.0
    %247 = vmatpush1.msra.mxu0 %v221
    %248 = vmatprep.subr.mxu0 0.0
    %249 = vmatpush1.msra.mxu0 %v222
    %250 = vmatprep.subr.mxu0 0.0
    %251 = vmatpush1.msra.mxu0 %v223
    %252 = vmatprep.subr.mxu0 0.0
    %253 = vmatpush1.msra.mxu0 %v224
    %254 = vmatprep.subr.mxu0 0.0
    %255 = vmatpush1.msra.mxu0 %v225
    %256 = vmatprep.subr.mxu0 0.0
    %257 = vmatpush1.msra.mxu0 %v226
    %258 = vmatprep.subr.mxu0 0.0
    %259 = vmatpush1.msra.mxu0 %v227
    %260 = vmatprep.subr.mxu0 0.0
    %261 = vmatpush1.msra.mxu0 %v228
    %262 = vmatprep.subr.mxu0 0.0
    %263 = vmatpush1.msra.mxu0 %v229
    %264 = vmatprep.subr.mxu0 0.0
    %265 = vmatpush1.msra.mxu0 %v230
    %266 = vmatprep.subr.mxu0 0.0
    %267 = vmatpush1.msra.mxu0 %v231
    %268 = vmatprep.subr.mxu0 0.0
    %269 = vmatpush1.msra.mxu0 %v232
    %270 = vmatprep.subr.mxu0 0.0
    %271 = vmatpush1.msra.mxu0 %v233
    %272 = vmatprep.subr.mxu0 0.0
    %273 = vmatpush1.msra.mxu0 %v234
    %274 = vmatprep.subr.mxu0 0.0
    %275 = vmatpush1.msra.mxu0 0.0
    %276 = vmatprep.subr.mxu0 0.0
    %277 = vmatpush1.msra.mxu0 0.0
    %278 = vmatprep.subr.mxu0 0.0
    %279 = vmatpush1.msra.mxu0 0.0
    %280 = vmatprep.subr.mxu0 0.0
    %281 = vmatpush1.msra.mxu0 0.0
    %282 = vmatprep.subr.mxu0 0.0
    %283 = vmatpush1.msra.mxu0 0.0
    %284 = vmatprep.subr.mxu0 0.0
    %285 = vmatpush1.msra.mxu0 0.0
    %286 = vmatprep.subr.mxu0 0.0
    %287 = vmatpush1.msra.mxu0 0.0
    %288 = vmatprep.subr.mxu0 0.0
    %289 = vmatpush1.msra.mxu0 0.0
    %290 = vmatprep.subr.mxu0 0.0
    %291 = vmatpush1.msra.mxu0 0.0
    %292 = vmatprep.subr.mxu0 0.0
    %293 = vmatpush1.msra.mxu0 0.0
    %294 = vmatprep.subr.mxu0 0.0
    %295 = vmatpush1.msra.mxu0 0.0
    %296 = vmatprep.subr.mxu0 0.0
    %297 = vmatpush1.msra.mxu0 0.0
    %298 = vmatprep.subr.mxu0 0.0
    %299 = vmatpush1.msra.mxu0 0.0
    %300 = vmatprep.subr.mxu0 0.0
    %301 = vmatpush1.msra.mxu0 0.0
    %302 = vmatprep.subr.mxu0 0.0
    %303 = vmatpush1.msra.mxu0 0.0
    %304 = vmatprep.subr.mxu0 0.0
    %305 = vmatpush1.msra.mxu0 0.0
    %306 = vmatprep.mubr.f32.mxu0 0.0
    %307 = vmatmul.mubr.f32.gmra.mrb[0].mxu0 %v217
    %v308 = vpop.f32.mrb[0].mxu0
    %v309 = vadd.f32 %v240, %v308
    %v310 = vpop.f32.mrb[0].mxu0
    %311 = vmatprep.mubr.f32.mxu0 0.0
    %312 = vmatmul.mubr.f32.gmra.mrb[0].mxu0 %v218
    %v313 = vpop.f32.mrb[0].mxu0
    %v314 = vadd.f32 %v240, %v313
    %v315 = vpop.f32.mrb[0].mxu0
    %316 = vdwg.mxu0
    %v317 = vmax.f32 %v309, 0.0
    %v318 = vmax.f32 %v314, 0.0
    %v319 = vld [vmem:[#allocation5] sm:$0xff]
    %v320 = vld [vmem:[#allocation5 + $0x8] sm:$0xff]
    %v321 = vld [vmem:[#allocation5 + $0x10] sm:$0xff]
    %v322 = vld [vmem:[#allocation5 + $0x18] sm:$0xff]
    %v323 = vld [vmem:[#allocation5 + $0x20] sm:$0xff]
    %v324 = vld [vmem:[#allocation5 + $0x28] sm:$0xff]
    %v325 = vld [vmem:[#allocation5 + $0x30] sm:$0xff]
    %v326 = vld [vmem:[#allocation5 + $0x38] sm:$0xff]
    %v327 = vld [vmem:[#allocation5 + $0x40] sm:$0xff]
    %v328 = vld [vmem:[#allocation5 + $0x48] sm:$0xff]
    %v329 = vld [vmem:[#allocation5 + $0x50] sm:$0xff]
    %v330 = vld [vmem:[#allocation5 + $0x58] sm:$0xff]
    %v331 = vld [vmem:[#allocation5 + $0x60] sm:$0xff]
    %v332 = vld [vmem:[#allocation5 + $0x68] sm:$0xff]
    %v333 = vld [vmem:[#allocation5 + $0x70] sm:$0xff]
    %v334 = vld [vmem:[#allocation5 + $0x78] sm:$0xff]
    %v335 = vld [vmem:[%s7] sm:$0x1]
    %v337 = vlaneseq
    %v338 = vshrl.u32 %v337, 7
    %v339 = vsub.s32 0, %v338
    %v340 = vrot.slane %v335, %v339
    %342 = vmatprep.subr.mxu0 0.0
    %343 = vmatpush1.msra.mxu0 %v319
    %344 = vmatprep.subr.mxu0 0.0
    %345 = vmatpush1.msra.mxu0 %v320
    %346 = vmatprep.subr.mxu0 0.0
    %347 = vmatpush1.msra.mxu0 %v321
    %348 = vmatprep.subr.mxu0 0.0
    %349 = vmatpush1.msra.mxu0 %v322
    %350 = vmatprep.subr.mxu0 0.0
    %351 = vmatpush1.msra.mxu0 %v323
    %352 = vmatprep.subr.mxu0 0.0
    %353 = vmatpush1.msra.mxu0 %v324
    %354 = vmatprep.subr.mxu0 0.0
    %355 = vmatpush1.msra.mxu0 %v325
    %356 = vmatprep.subr.mxu0 0.0
    %357 = vmatpush1.msra.mxu0 %v326
    %358 = vmatprep.subr.mxu0 0.0
    %359 = vmatpush1.msra.mxu0 %v327
    %360 = vmatprep.subr.mxu0 0.0
    %361 = vmatpush1.msra.mxu0 %v328
    %362 = vmatprep.subr.mxu0 0.0
    %363 = vmatpush1.msra.mxu0 %v329
    %364 = vmatprep.subr.mxu0 0.0
    %365 = vmatpush1.msra.mxu0 %v330
    %366 = vmatprep.subr.mxu0 0.0
    %367 = vmatpush1.msra.mxu0 %v331
    %368 = vmatprep.subr.mxu0 0.0
    %369 = vmatpush1.msra.mxu0 %v332
    %370 = vmatprep.subr.mxu0 0.0
    %371 = vmatpush1.msra.mxu0 %v333
    %372 = vmatprep.subr.mxu0 0.0
    %373 = vmatpush1.msra.mxu0 %v334
    %374 = vmatprep.subr.mxu0 0.0
    %375 = vmatpush1.msra.mxu0 0.0
    %376 = vmatprep.subr.mxu0 0.0
    %377 = vmatpush1.msra.mxu0 0.0
    %378 = vmatprep.subr.mxu0 0.0
    %379 = vmatpush1.msra.mxu0 0.0
    %380 = vmatprep.subr.mxu0 0.0
    %381 = vmatpush1.msra.mxu0 0.0
    %382 = vmatprep.subr.mxu0 0.0
    %383 = vmatpush1.msra.mxu0 0.0
    %384 = vmatprep.subr.mxu0 0.0
    %385 = vmatpush1.msra.mxu0 0.0
    %386 = vmatprep.subr.mxu0 0.0
    %387 = vmatpush1.msra.mxu0 0.0
    %388 = vmatprep.subr.mxu0 0.0
    %389 = vmatpush1.msra.mxu0 0.0
    %390 = vmatprep.subr.mxu0 0.0
    %391 = vmatpush1.msra.mxu0 0.0
    %392 = vmatprep.subr.mxu0 0.0
    %393 = vmatpush1.msra.mxu0 0.0
    %394 = vmatprep.subr.mxu0 0.0
    %395 = vmatpush1.msra.mxu0 0.0
    %396 = vmatprep.subr.mxu0 0.0
    %397 = vmatpush1.msra.mxu0 0.0
    %398 = vmatprep.subr.mxu0 0.0
    %399 = vmatpush1.msra.mxu0 0.0
    %400 = vmatprep.subr.mxu0 0.0
    %401 = vmatpush1.msra.mxu0 0.0
    %402 = vmatprep.subr.mxu0 0.0
    %403 = vmatpush1.msra.mxu0 0.0
    %404 = vmatprep.subr.mxu0 0.0
    %405 = vmatpush1.msra.mxu0 0.0
    %406 = vmatprep.mubr.f32.mxu0 0.0
    %407 = vmatmul.mubr.f32.gmra.mrb[0].mxu0 %v317
    %v408 = vpop.f32.mrb[0].mxu0
    %v409 = vadd.f32 %v340, %v408
    %v410 = vpop.f32.mrb[0].mxu0
    %411 = vmatprep.mubr.f32.mxu0 0.0
    %412 = vmatmul.mubr.f32.gmra.mrb[0].mxu0 %v318
    %v413 = vpop.f32.mrb[0].mxu0
    %v414 = vadd.f32 %v340, %v413
    %v415 = vpop.f32.mrb[0].mxu0
    %416 = vdwg.mxu0
    %v417 = vld [vmem:[#allocation7] sm:$0xff]
    %v418 = vld [vmem:[#allocation7 + $0x8] sm:$0xff]
    %v419 = vld [vmem:[#allocation7 + $0x10] sm:$0xff]
    %v420 = vld [vmem:[#allocation7 + $0x18] sm:$0xff]
    %v421 = vld [vmem:[#allocation7 + $0x20] sm:$0xff]
    %v422 = vld [vmem:[#allocation7 + $0x28] sm:$0xff]
    %v423 = vld [vmem:[#allocation7 + $0x30] sm:$0xff]
    %v424 = vld [vmem:[#allocation7 + $0x38] sm:$0xff]
    %v425 = vld [vmem:[#allocation7 + $0x40] sm:$0xff]
    %v426 = vld [vmem:[#allocation7 + $0x48] sm:$0xff]
    %v427 = vld [vmem:[#allocation7 + $0x50] sm:$0xff]
    %v428 = vld [vmem:[#allocation7 + $0x58] sm:$0xff]
    %v429 = vld [vmem:[#allocation7 + $0x60] sm:$0xff]
    %v430 = vld [vmem:[#allocation7 + $0x68] sm:$0xff]
    %v431 = vld [vmem:[#allocation7 + $0x70] sm:$0xff]
    %v432 = vld [vmem:[#allocation7 + $0x78] sm:$0xff]
    %v433 = vld [vmem:[%s9] sm:$0x1]
    %v435 = vlaneseq
    %v436 = vshrl.u32 %v435, 7
    %v437 = vsub.s32 0, %v436
    %v438 = vrot.slane %v433, %v437
    %440 = vmatprep.subr.mxu0 0.0
    %441 = vmatpush1.msra.mxu0 %v417
    %442 = vmatprep.subr.mxu0 0.0
    %443 = vmatpush1.msra.mxu0 %v418
    %444 = vmatprep.subr.mxu0 0.0
    %445 = vmatpush1.msra.mxu0 %v419
    %446 = vmatprep.subr.mxu0 0.0
    %447 = vmatpush1.msra.mxu0 %v420
    %448 = vmatprep.subr.mxu0 0.0
    %449 = vmatpush1.msra.mxu0 %v421
    %450 = vmatprep.subr.mxu0 0.0
    %451 = vmatpush1.msra.mxu0 %v422
    %452 = vmatprep.subr.mxu0 0.0
    %453 = vmatpush1.msra.mxu0 %v423
    %454 = vmatprep.subr.mxu0 0.0
    %455 = vmatpush1.msra.mxu0 %v424
    %456 = vmatprep.subr.mxu0 0.0
    %457 = vmatpush1.msra.mxu0 %v425
    %458 = vmatprep.subr.mxu0 0.0
    %459 = vmatpush1.msra.mxu0 %v426
    %460 = vmatprep.subr.mxu0 0.0
    %461 = vmatpush1.msra.mxu0 %v427
    %462 = vmatprep.subr.mxu0 0.0
    %463 = vmatpush1.msra.mxu0 %v428
    %464 = vmatprep.subr.mxu0 0.0
    %465 = vmatpush1.msra.mxu0 %v429
    %466 = vmatprep.subr.mxu0 0.0
    %467 = vmatpush1.msra.mxu0 %v430
    %468 = vmatprep.subr.mxu0 0.0
    %469 = vmatpush1.msra.mxu0 %v431
    %470 = vmatprep.subr.mxu0 0.0
    %471 = vmatpush1.msra.mxu0 %v432
    %472 = vmatprep.subr.mxu0 0.0
    %473 = vmatpush1.msra.mxu0 0.0
    %474 = vmatprep.subr.mxu0 0.0
    %475 = vmatpush1.msra.mxu0 0.0
    %476 = vmatprep.subr.mxu0 0.0
    %477 = vmatpush1.msra.mxu0 0.0
    %478 = vmatprep.subr.mxu0 0.0
    %479 = vmatpush1.msra.mxu0 0.0
    %480 = vmatprep.subr.mxu0 0.0
    %481 = vmatpush1.msra.mxu0 0.0
    %482 = vmatprep.subr.mxu0 0.0
    %483 = vmatpush1.msra.mxu0 0.0
    %484 = vmatprep.subr.mxu0 0.0
    %485 = vmatpush1.msra.mxu0 0.0
    %486 = vmatprep.subr.mxu0 0.0
    %487 = vmatpush1.msra.mxu0 0.0
    %488 = vmatprep.subr.mxu0 0.0
    %489 = vmatpush1.msra.mxu0 0.0
    %490 = vmatprep.subr.mxu0 0.0
    %491 = vmatpush1.msra.mxu0 0.0
    %492 = vmatprep.subr.mxu0 0.0
    %493 = vmatpush1.msra.mxu0 0.0
    %494 = vmatprep.subr.mxu0 0.0
    %495 = vmatpush1.msra.mxu0 0.0
    %496 = vmatprep.subr.mxu0 0.0
    %497 = vmatpush1.msra.mxu0 0.0
    %498 = vmatprep.subr.mxu0 0.0
    %499 = vmatpush1.msra.mxu0 0.0
    %500 = vmatprep.subr.mxu0 0.0
    %501 = vmatpush1.msra.mxu0 0.0
    %502 = vmatprep.subr.mxu0 0.0
    %503 = vmatpush1.msra.mxu0 0.0
    %504 = vmatprep.mubr.f32.mxu0 0.0
    %505 = vmatmul.mubr.f32.gmra.mrb[0].mxu0 %v409
    %v506 = vpop.f32.mrb[0].mxu0
    %v507 = vadd.f32 %v438, %v506
    %v508 = vpop.f32.mrb[0].mxu0
    %509 = vmatprep.mubr.f32.mxu0 0.0
    %510 = vmatmul.mubr.f32.gmra.mrb[0].mxu0 %v414
    %v511 = vpop.f32.mrb[0].mxu0
    %v512 = vadd.f32 %v438, %v511
    %v513 = vpop.f32.mrb[0].mxu0
    %514 = vdwg.mxu0
    %v515 = vmax.f32 %v507, 0.0
    %v516 = vmax.f32 %v512, 0.0
    %v517 = vld [vmem:[#allocation8] sm:$0xff]
    %v518 = vld [vmem:[#allocation8 + $0x8] sm:$0xff]
    %v519 = vld [vmem:[#allocation8 + $0x10] sm:$0xff]
    %v520 = vld [vmem:[#allocation8 + $0x18] sm:$0xff]
    %v521 = vld [vmem:[#allocation8 + $0x20] sm:$0xff]
    %v522 = vld [vmem:[#allocation8 + $0x28] sm:$0xff]
    %v523 = vld [vmem:[#allocation8 + $0x30] sm:$0xff]
    %v524 = vld [vmem:[#allocation8 + $0x38] sm:$0xff]
    %v525 = vld [vmem:[#allocation8 + $0x40] sm:$0xff]
    %v526 = vld [vmem:[#allocation8 + $0x48] sm:$0xff]
    %v527 = vld [vmem:[#allocation8 + $0x50] sm:$0xff]
    %v528 = vld [vmem:[#allocation8 + $0x58] sm:$0xff]
    %v529 = vld [vmem:[#allocation8 + $0x60] sm:$0xff]
    %v530 = vld [vmem:[#allocation8 + $0x68] sm:$0xff]
    %v531 = vld [vmem:[#allocation8 + $0x70] sm:$0xff]
    %v532 = vld [vmem:[#allocation8 + $0x78] sm:$0xff]
    %v533 = vld [vmem:[%s11] sm:$0x1]
    %v535 = vlaneseq
    %v536 = vshrl.u32 %v535, 7
    %v537 = vsub.s32 0, %v536
    %v538 = vrot.slane %v533, %v537
    %540 = vmatprep.subr.mxu0 0.0
    %541 = vmatpush1.msra.mxu0 %v517
    %542 = vmatprep.subr.mxu0 0.0
    %543 = vmatpush1.msra.mxu0 %v518
    %544 = vmatprep.subr.mxu0 0.0
    %545 = vmatpush1.msra.mxu0 %v519
    %546 = vmatprep.subr.mxu0 0.0
    %547 = vmatpush1.msra.mxu0 %v520
    %548 = vmatprep.subr.mxu0 0.0
    %549 = vmatpush1.msra.mxu0 %v521
    %550 = vmatprep.subr.mxu0 0.0
    %551 = vmatpush1.msra.mxu0 %v522
    %552 = vmatprep.subr.mxu0 0.0
    %553 = vmatpush1.msra.mxu0 %v523
    %554 = vmatprep.subr.mxu0 0.0
    %555 = vmatpush1.msra.mxu0 %v524
    %556 = vmatprep.subr.mxu0 0.0
    %557 = vmatpush1.msra.mxu0 %v525
    %558 = vmatprep.subr.mxu0 0.0
    %559 = vmatpush1.msra.mxu0 %v526
    %560 = vmatprep.subr.mxu0 0.0
    %561 = vmatpush1.msra.mxu0 %v527
    %562 = vmatprep.subr.mxu0 0.0
    %563 = vmatpush1.msra.mxu0 %v528
    %564 = vmatprep.subr.mxu0 0.0
    %565 = vmatpush1.msra.mxu0 %v529
    %566 = vmatprep.subr.mxu0 0.0
    %567 = vmatpush1.msra.mxu0 %v530
    %568 = vmatprep.subr.mxu0 0.0
    %569 = vmatpush1.msra.mxu0 %v531
    %570 = vmatprep.subr.mxu0 0.0
    %571 = vmatpush1.msra.mxu0 %v532
    %572 = vmatprep.subr.mxu0 0.0
    %573 = vmatpush1.msra.mxu0 0.0
    %574 = vmatprep.subr.mxu0 0.0
    %575 = vmatpush1.msra.mxu0 0.0
    %576 = vmatprep.subr.mxu0 0.0
    %577 = vmatpush1.msra.mxu0 0.0
    %578 = vmatprep.subr.mxu0 0.0
    %579 = vmatpush1.msra.mxu0 0.0
    %580 = vmatprep.subr.mxu0 0.0
    %581 = vmatpush1.msra.mxu0 0.0
    %582 = vmatprep.subr.mxu0 0.0
    %583 = vmatpush1.msra.mxu0 0.0
    %584 = vmatprep.subr.mxu0 0.0
    %585 = vmatpush1.msra.mxu0 0.0
    %586 = vmatprep.subr.mxu0 0.0
    %587 = vmatpush1.msra.mxu0 0.0
    %588 = vmatprep.subr.mxu0 0.0
    %589 = vmatpush1.msra.mxu0 0.0
    %590 = vmatprep.subr.mxu0 0.0
    %591 = vmatpush1.msra.mxu0 0.0
    %592 = vmatprep.subr.mxu0 0.0
    %593 = vmatpush1.msra.mxu0 0.0
    %594 = vmatprep.subr.mxu0 0.0
    %595 = vmatpush1.msra.mxu0 0.0
    %596 = vmatprep.subr.mxu0 0.0
    %597 = vmatpush1.msra.mxu0 0.0
    %598 = vmatprep.subr.mxu0 0.0
    %599 = vmatpush1.msra.mxu0 0.0
    %600 = vmatprep.subr.mxu0 0.0
    %601 = vmatpush1.msra.mxu0 0.0
    %602 = vmatprep.subr.mxu0 0.0
    %603 = vmatpush1.msra.mxu0 0.0
    %604 = vmatprep.mubr.f32.mxu0 0.0
    %605 = vmatmul.mubr.f32.gmra.mrb[0].mxu0 %v515
    %v606 = vpop.f32.mrb[0].mxu0
    %v607 = vadd.f32 %v538, %v606
    %v608 = vpop.f32.mrb[0].mxu0
    %609 = vmatprep.mubr.f32.mxu0 0.0
    %610 = vmatmul.mubr.f32.gmra.mrb[0].mxu0 %v516
    %v611 = vpop.f32.mrb[0].mxu0
    %v612 = vadd.f32 %v538, %v611
    %v613 = vpop.f32.mrb[0].mxu0
    %614 = vdwg.mxu0
    %v615 = vmax.f32 %v607, 0.0
    %v616 = vmax.f32 %v612, 0.0
    %v617 = vld [vmem:[%s12] sm:$0xff]
    %v618 = vld [vmem:[%s12 + $0x8] sm:$0xff]
    %v619 = vld [vmem:[%s12 + $0x10] sm:$0xff]
    %v620 = vld [vmem:[%s12 + $0x18] sm:$0xff]
    %v621 = vld [vmem:[%s12 + $0x20] sm:$0xff]
    %v622 = vld [vmem:[%s12 + $0x28] sm:$0xff]
    %v623 = vld [vmem:[%s12 + $0x30] sm:$0xff]
    %v624 = vld [vmem:[%s12 + $0x38] sm:$0xff]
    %v625 = vld [vmem:[%s12 + $0x40] sm:$0xff]
    %v626 = vld [vmem:[%s12 + $0x48] sm:$0xff]
    %v627 = vld [vmem:[%s12 + $0x50] sm:$0xff]
    %v628 = vld [vmem:[%s12 + $0x58] sm:$0xff]
    %v629 = vld [vmem:[%s12 + $0x60] sm:$0xff]
    %v630 = vld [vmem:[%s12 + $0x68] sm:$0xff]
    %v631 = vld [vmem:[%s12 + $0x70] sm:$0xff]
    %v632 = vld [vmem:[%s12 + $0x78] sm:$0xff]
    %v633 = vld [vmem:[%s13] sm:$0x1]
    %v635 = vlaneseq
    %v636 = vshrl.u32 %v635, 7
    %v637 = vsub.s32 0, %v636
    %v638 = vrot.slane %v633, %v637
    %640 = vmatprep.subr.mxu0 0.0
    %641 = vmatpush1.msra.mxu0 %v617
    %642 = vmatprep.subr.mxu0 0.0
    %643 = vmatpush1.msra.mxu0 %v618
    %644 = vmatprep.subr.mxu0 0.0
    %645 = vmatpush1.msra.mxu0 %v619
    %646 = vmatprep.subr.mxu0 0.0
    %647 = vmatpush1.msra.mxu0 %v620
    %648 = vmatprep.subr.mxu0 0.0
    %649 = vmatpush1.msra.mxu0 %v621
    %650 = vmatprep.subr.mxu0 0.0
    %651 = vmatpush1.msra.mxu0 %v622
    %652 = vmatprep.subr.mxu0 0.0
    %653 = vmatpush1.msra.mxu0 %v623
    %654 = vmatprep.subr.mxu0 0.0
    %655 = vmatpush1.msra.mxu0 %v624
    %656 = vmatprep.subr.mxu0 0.0
    %657 = vmatpush1.msra.mxu0 %v625
    %658 = vmatprep.subr.mxu0 0.0
    %659 = vmatpush1.msra.mxu0 %v626
    %660 = vmatprep.subr.mxu0 0.0
    %661 = vmatpush1.msra.mxu0 %v627
    %662 = vmatprep.subr.mxu0 0.0
    %663 = vmatpush1.msra.mxu0 %v628
    %664 = vmatprep.subr.mxu0 0.0
    %665 = vmatpush1.msra.mxu0 %v629
    %666 = vmatprep.subr.mxu0 0.0
    %667 = vmatpush1.msra.mxu0 %v630
    %668 = vmatprep.subr.mxu0 0.0
    %669 = vmatpush1.msra.mxu0 %v631
    %670 = vmatprep.subr.mxu0 0.0
    %671 = vmatpush1.msra.mxu0 %v632
    %672 = vmatprep.subr.mxu0 0.0
    %673 = vmatpush1.msra.mxu0 0.0
    %674 = vmatprep.subr.mxu0 0.0
    %675 = vmatpush1.msra.mxu0 0.0
    %676 = vmatprep.subr.mxu0 0.0
    %677 = vmatpush1.msra.mxu0 0.0
    %678 = vmatprep.subr.mxu0 0.0
    %679 = vmatpush1.msra.mxu0 0.0
    %680 = vmatprep.subr.mxu0 0.0
    %681 = vmatpush1.msra.mxu0 0.0
    %682 = vmatprep.subr.mxu0 0.0
    %683 = vmatpush1.msra.mxu0 0.0
    %684 = vmatprep.subr.mxu0 0.0
    %685 = vmatpush1.msra.mxu0 0.0
    %686 = vmatprep.subr.mxu0 0.0
    %687 = vmatpush1.msra.mxu0 0.0
    %688 = vmatprep.subr.mxu0 0.0
    %689 = vmatpush1.msra.mxu0 0.0
    %690 = vmatprep.subr.mxu0 0.0
    %691 = vmatpush1.msra.mxu0 0.0
    %692 = vmatprep.subr.mxu0 0.0
    %693 = vmatpush1.msra.mxu0 0.0
    %694 = vmatprep.subr.mxu0 0.0
    %695 = vmatpush1.msra.mxu0 0.0
    %696 = vmatprep.subr.mxu0 0.0
    %697 = vmatpush1.msra.mxu0 0.0
    %698 = vmatprep.subr.mxu0 0.0
    %699 = vmatpush1.msra.mxu0 0.0
    %700 = vmatprep.subr.mxu0 0.0
    %701 = vmatpush1.msra.mxu0 0.0
    %702 = vmatprep.subr.mxu0 0.0
    %703 = vmatpush1.msra.mxu0 0.0
    %704 = vmatprep.mubr.f32.mxu0 0.0
    %705 = vmatmul.mubr.f32.gmra.mrb[0].mxu0 %v615
    %v706 = vpop.f32.mrb[0].mxu0
    %v707 = vadd.f32 %v638, %v706
    %v708 = vpop.f32.mrb[0].mxu0
    %709 = vmatprep.mubr.f32.mxu0 0.0
    %710 = vmatmul.mubr.f32.gmra.mrb[0].mxu0 %v616
    %v711 = vpop.f32.mrb[0].mxu0
    %v712 = vadd.f32 %v638, %v711
    %v713 = vpop.f32.mrb[0].mxu0
    %714 = vdwg.mxu0
    %715 = vst.msk [vmem:[#allocation10] sm:$0xff] %vm135, %v707
    %716 = vst.msk [vmem:[#allocation10 + $0x8] sm:$0xff] %vm135, %v712
    %vm717 = vmpackc.low %vm115, %vm114
    %vm718 = vmpackc.even %vm717, %vm717
    %v719 = vsel %vm718, 16843009, 0
    %v720 = vunpack.c.0.s8 %v719
    %v721 = vunpack.c.1.s8 %v719
    %v722 = vpack.c.b16 %v720, %v720
    %v723 = vpack.c.b8 %v722, %v722
    %v724 = vpack.c.b16 %v721, %v721
    %v725 = vpack.c.b8 %v724, %v724
    %vm726 = vcmask 254976
    %727 = vst.msk [vmem:[#allocation11] sm:$0x3] %vm726, %v723
    %728 = vst.msk [vmem:[#allocation11 + $0x2] sm:$0x3] %vm726, %v725
    // Predicated region
    $region74: #{tpu_custom_call.1} parent=1 // pred_check
      _
    $region75: #{tpu_custom_call.1} parent=1 // pred_check_branch
      %730 = sbr.rel (0) target = $region77
    $region76: #{tpu_custom_call.1} parent=1 // pred_region
      %s732 = ssub.s32 256, 256
      %733 = vsyncadd [#allocation4], %s732
      %s734 = sshll.u32 [#allocation10], 4
      %s735 = int_to_ptr.vmem [resolvable:$true] %s734
      %740 = dma.vmem_to_hbm [thread:$0]  %s735, 256, %s14, [#allocation4], 128, 128, 8
    $region77: #{tpu_custom_call.1} parent=1 // pred_fallthru
      _
    // Predicated region
    $region78: #{tpu_custom_call.1} parent=1 // pred_check
      _
    $region79: #{tpu_custom_call.1} parent=1 // pred_check_branch
      %742 = sbr.rel (0) target = $region81
    $region80: #{tpu_custom_call.1} parent=1 // pred_region
      %s744 = ssub.s32 64, 64
      %745 = vsyncadd [#allocation12], %s744
      %s746 = sshll.u32 [#allocation11], 4
      %s747 = int_to_ptr.vmem [resolvable:$true] %s746
      %752 = dma.vmem_to_hbm [thread:$0]  %s747, 64, %s15, [#allocation12], 32, 32, 2
    $region81: #{tpu_custom_call.1} parent=1 // pred_fallthru
      _
    // Predicated region
    $region82: #{tpu_custom_call.1} parent=1 // pred_check
      _
    $region83: #{tpu_custom_call.1} parent=1 // pred_check_branch
      %754 = sbr.rel (0) target = $region85
    $region84: #{tpu_custom_call.1} parent=1 // pred_region
      %755 = dma.done [#allocation4], 256
    $region85: #{tpu_custom_call.1} parent=1 // pred_fallthru
      _
    // Predicated region
    $region86: #{tpu_custom_call.1} parent=1 // pred_check
      _
    $region87: #{tpu_custom_call.1} parent=1 // pred_check_branch
      %757 = sbr.rel (0) target = $region89
    $region88: #{tpu_custom_call.1} parent=1 // pred_region
      %758 = dma.done [#allocation12], 64
    $region89: #{tpu_custom_call.1} parent=1 // pred_fallthru
      _
    %759 = vsyncpa [#allocation3], 1
    %760 = vsyncpa [#allocation6], 1
    %761 = vsyncpa [#allocation9], 1
    %762 = vsyncpa [#allocation4], 1
    %763 = vsyncpa [#allocation12], 1

</llo_original>
